<compile_context>
chip_gen: v6e
topology: v6e:2x2x1
jax: 0.10.0
libtpu: 0.0.40
codegen_flags: <defaults>
</compile_context>

<pallas_src>
import functools

import jax
import jax.numpy as jnp
from jax.experimental import pallas as pl
from jax.experimental.pallas import tpu as pltpu


def _round_up(x: int, m: int) -> int:
    return ((x + m - 1) // m) * m


def _cdiv(a: int, b: int) -> int:
    return (a + b - 1) // b


def _min_grid_steps() -> int:
    """>= 2 grid steps on v7x (2 TensorCores/chip); 1 elsewhere."""
    try:
        kind = (jax.devices()[0].device_kind or "").lower()
    except Exception:
        return 1
    return 2 if "v7" in kind else 1


def _choose_tiling(B: int, tb_max: int):
    """Pick (tb, grid_b): 8-aligned, balanced, >=2 steps on v7x."""
    Bp8 = _round_up(max(B, 1), 8)                    # pad only to sublane multiple
    tb_cap = min(_round_up(max(tb_max, 8), 8), Bp8)
    min_steps = _min_grid_steps()
    if min_steps > 1 and Bp8 >= 8 * min_steps:
        tb_cap = min(tb_cap, _round_up(_cdiv(Bp8, min_steps), 8))
    grid_b = _cdiv(Bp8, tb_cap)
    tb = _round_up(_cdiv(Bp8, grid_b), 8)            # balanced -> minimal padding
    return tb, grid_b


def _resident_spec(shape, single_buffer: bool) -> pl.BlockSpec:
    """BlockSpec for a grid-invariant (weight/bias) operand."""
    zeros = (0,) * len(shape)
    idx = lambda i: zeros
    if single_buffer:
        try:
            # Constant index_map -> fetched once; single buffer halves its VMEM.
            return pl.BlockSpec(shape, idx, pipeline_mode=pl.Buffered(1))
        except TypeError:
            pass
    return pl.BlockSpec(shape, idx)


def decoder_kernel(z_ref, w1_ref, b1_ref, w2_ref, b2_ref, o_ref):
    # fc1: bf16 MXU matmul with f32 accumulation; bias + ReLU in f32.
    h = jnp.dot(z_ref[...], w1_ref[...], preferred_element_type=jnp.float32)
    h = jnp.maximum(h + b1_ref[...], 0.0)
    # fc2: cast activation back to bf16 for the MXU; accumulate in f32.
    y = jnp.dot(h.astype(jnp.bfloat16), w2_ref[...],
                preferred_element_type=jnp.float32)
    o_ref[...] = (y + b2_ref[...]).astype(o_ref.dtype)


@functools.partial(jax.jit,
                   static_argnames=("tb", "grid_b", "single_buffer_weights"))
def _decoder_call(z, w1, b1, w2, b2, *, tb, grid_b, single_buffer_weights):
    B, L = z.shape
    H = w1.shape[1]
    N = w2.shape[1]
    Bp = tb * grid_b

    # bf16 operands: halves weight/activation HBM bytes and runs the MXU at
    # its native bf16 rate. Biases stay f32 (f32 bias-add/ReLU, v5e-safe).
    z_bf = z.astype(jnp.bfloat16)
    w1_bf = w1.astype(jnp.bfloat16)
    w2_bf = w2.astype(jnp.bfloat16)
    b1_f = b1.astype(jnp.float32).reshape(1, H)
    b2_f = b2.astype(jnp.float32).reshape(1, N)

    if Bp != B:
        z_bf = jnp.pad(z_bf, ((0, Bp - B), (0, 0)))

    # Size the scoped-VMEM limit from the real buffer sum (with margin).
    wbufs = 1 if single_buffer_weights else 2
    vmem_bytes = (
        wbufs * (L * H + H * N) * 2          # resident bf16 weights
        + 2 * (H + N) * 4                    # biases (f32)
        + 2 * tb * L * 2                     # z tile, double-buffered (bf16)
        + 2 * tb * N * 4                     # out tile, double-buffered (f32)
        + tb * (H + N) * 4                   # fc1 activation + fc2 accumulator
    )
    vmem_limit = min(max(2 * vmem_bytes + (8 << 20), 32 << 20), 128 << 20)

    cost = pl.CostEstimate(
        flops=2 * Bp * (L * H + H * N),
        transcendentals=0,
        bytes_accessed=2 * (Bp * L + L * H + H * N) + 4 * (H + N + Bp * N),
    )

    out = pl.pallas_call(
        decoder_kernel,
        out_shape=jax.ShapeDtypeStruct((Bp, N), jnp.float32),
        grid_spec=pltpu.PrefetchScalarGridSpec(
            num_scalar_prefetch=0,
            grid=(grid_b,),
            in_specs=[
                pl.BlockSpec((tb, L), lambda i: (i, 0)),        # z batch tile
                _resident_spec((L, H), single_buffer_weights),  # W1
                _resident_spec((1, H), single_buffer_weights),  # b1
                _resident_spec((H, N), single_buffer_weights),  # W2
                _resident_spec((1, N), single_buffer_weights),  # b2
            ],
            out_specs=pl.BlockSpec((tb, N), lambda i: (i, 0)),  # lane-dense
        ),
        compiler_params=pltpu.CompilerParams(
            dimension_semantics=("parallel",),
            vmem_limit_bytes=vmem_limit),
        cost_estimate=cost,
    )(z_bf, w1_bf, b1_f, w2_bf, b2_f)

    return out[:B] if Bp != B else out


def decoder_forward(z, w1, b1, w2, b2, *, tb_max=512):
    """z: (B, L); w1: (L, H); b1: (1, H); w2: (H, N); b2: (1, N) -> (B, N) f32."""
    tb, grid_b = _choose_tiling(z.shape[0], tb_max)
    try:
        return _decoder_call(z, w1, b1, w2, b2, tb=tb, grid_b=grid_b,
                             single_buffer_weights=True)
    except Exception:
        # Fallback if this JAX build rejects pl.Buffered(1) single-buffering.
        return _decoder_call(z, w1, b1, w2, b2, tb=tb, grid_b=grid_b,
                             single_buffer_weights=False)


def init_decoder_params(key, latent_dim, hidden_dim, input_dim, dtype=jnp.float32):
    """Deterministic PyTorch-style (uniform +-1/sqrt(fan_in)) init."""
    k1, k2, k3, k4 = jax.random.split(key, 4)
    bound1 = 1.0 / jnp.sqrt(latent_dim)
    bound2 = 1.0 / jnp.sqrt(hidden_dim)
    w1 = jax.random.uniform(k1, (latent_dim, hidden_dim), dtype, -bound1, bound1)
    b1 = jax.random.uniform(k2, (1, hidden_dim), dtype, -bound1, bound1)
    w2 = jax.random.uniform(k3, (hidden_dim, input_dim), dtype, -bound2, bound2)
    b2 = jax.random.uniform(k4, (1, input_dim), dtype, -bound2, bound2)
    return w1, b1, w2, b2


if __name__ == "__main__":
    # Small shapes consistent with the module (latent -> hidden -> input).
    B, LATENT, HIDDEN, INPUT = 8, 32, 256, 512

    key = jax.random.PRNGKey(0)
    kz, kp = jax.random.split(key)
    z = jax.random.normal(kz, (B, LATENT), jnp.float32)
    w1, b1, w2, b2 = init_decoder_params(kp, LATENT, HIDDEN, INPUT)

    out = decoder_forward(z, w1, b1, w2, b2)
    out = jax.block_until_ready(out)

    # Pure-JAX f32 reference; tolerance loosened for the bf16 matmul operands
    # (accumulation stays f32, so ~1e-2-level agreement is expected).
    ref = jnp.maximum(z @ w1 + b1, 0.0) @ w2 + b2
    assert out.shape == (B, INPUT)
    assert jnp.allclose(out, ref, atol=2e-2, rtol=2e-2), "mismatch vs reference"

    print("KERNEL_OK")
</pallas_src>

<mosaic_0001>
module attributes {stable_mosaic.version = 11 : i64} {
  func.func @decoder_kernel(%arg0: i32, %arg1: memref<8x32xbf16, #tpu.memory_space<vmem>>, %arg2: memref<32x256xbf16, #tpu.memory_space<vmem>>, %arg3: memref<1x256xf32, #tpu.memory_space<vmem>>, %arg4: memref<256x512xbf16, #tpu.memory_space<vmem>>, %arg5: memref<1x512xf32, #tpu.memory_space<vmem>>, %arg6: memref<8x512xf32, #tpu.memory_space<vmem>>) attributes {dimension_semantics = [#tpu.dimension_semantics<parallel>], iteration_bounds = array<i64: 1>, scalar_prefetch = 0 : i64, scratch_operands = 0 : i64, tpu.core_type = #tpu.core_type<tc>, window_params = [{transform_indices = @transform_0, window_bounds = array<i64: 8, 32>}, {pipeline_mode = #tpu.pipeline_mode<synchronous>, transform_indices = @transform_1, window_bounds = array<i64: 32, 256>}, {pipeline_mode = #tpu.pipeline_mode<synchronous>, transform_indices = @transform_2, window_bounds = array<i64: 1, 256>}, {pipeline_mode = #tpu.pipeline_mode<synchronous>, transform_indices = @transform_3, window_bounds = array<i64: 256, 512>}, {pipeline_mode = #tpu.pipeline_mode<synchronous>, transform_indices = @transform_4, window_bounds = array<i64: 1, 512>}, {transform_indices = @transform_5, window_bounds = array<i64: 8, 512>}]} {
    %c0 = arith.constant 0 : index
    %c0_0 = arith.constant 0 : index
    %0 = vector.load %arg1[%c0, %c0_0] : memref<8x32xbf16, #tpu.memory_space<vmem>>, vector<8x32xbf16>
    %c0_1 = arith.constant 0 : index
    %c0_2 = arith.constant 0 : index
    %1 = vector.load %arg2[%c0_1, %c0_2] : memref<32x256xbf16, #tpu.memory_space<vmem>>, vector<32x256xbf16>
    %cst = arith.constant dense<0.000000e+00> : vector<8x256xf32>
    %2 = tpu.matmul %0, %1, %cst {dimension_numbers = #tpu.dot_dimension_numbers<[1], [0], [0], [1], [0, 0, 1, 1], [], []>} : vector<8x32xbf16>, vector<32x256xbf16>, vector<8x256xf32> -> vector<8x256xf32>
    %c0_3 = arith.constant 0 : index
    %c0_4 = arith.constant 0 : index
    %3 = vector.load %arg3[%c0_3, %c0_4] : memref<1x256xf32, #tpu.memory_space<vmem>>, vector<1x256xf32>
    %4 = vector.broadcast %3 : vector<1x256xf32> to vector<8x256xf32>
    %5 = arith.addf %2, %4 : vector<8x256xf32>
    %cst_5 = arith.constant 0.000000e+00 : f32
    %6 = vector.broadcast %cst_5 : f32 to vector<8x256xf32>
    %7 = arith.maximumf %5, %6 : vector<8x256xf32>
    %8 = arith.truncf %7 : vector<8x256xf32> to vector<8x256xbf16>
    %c0_6 = arith.constant 0 : index
    %c0_7 = arith.constant 0 : index
    %9 = vector.load %arg4[%c0_6, %c0_7] : memref<256x512xbf16, #tpu.memory_space<vmem>>, vector<256x512xbf16>
    %cst_8 = arith.constant dense<0.000000e+00> : vector<8x512xf32>
    %10 = tpu.matmul %8, %9, %cst_8 {dimension_numbers = #tpu.dot_dimension_numbers<[1], [0], [0], [1], [0, 0, 1, 1], [], []>} : vector<8x256xbf16>, vector<256x512xbf16>, vector<8x512xf32> -> vector<8x512xf32>
    %c0_9 = arith.constant 0 : index
    %c0_10 = arith.constant 0 : index
    %11 = vector.load %arg5[%c0_9, %c0_10] : memref<1x512xf32, #tpu.memory_space<vmem>>, vector<1x512xf32>
    %12 = vector.broadcast %11 : vector<1x512xf32> to vector<8x512xf32>
    %13 = arith.addf %10, %12 : vector<8x512xf32>
    %c0_11 = arith.constant 0 : index
    %c0_12 = arith.constant 0 : index
    %14 = vector.load %arg6[%c0_11, %c0_12] : memref<8x512xf32, #tpu.memory_space<vmem>>, vector<8x512xf32>
    tpu.vector_store %arg6[%c0_11, %c0_12], %13 {strides = array<i32>} : memref<8x512xf32, #tpu.memory_space<vmem>>, vector<8x512xf32>,
    return
  }
  func.func @transform_0(%arg0: i32) -> (i32, i32) {
    %c0_i32 = arith.constant 0 : i32
    %c0_i32_0 = arith.constant 0 : i32
    return %arg0, %c0_i32 : i32, i32
  }
  func.func @transform_1(%arg0: i32) -> (i32, i32) {
    %c0_i32 = arith.constant 0 : i32
    %c0_i32_0 = arith.constant 0 : i32
    %c0_i32_1 = arith.constant 0 : i32
    return %c0_i32, %c0_i32_0 : i32, i32
  }
  func.func @transform_2(%arg0: i32) -> (i32, i32) {
    %c0_i32 = arith.constant 0 : i32
    %c0_i32_0 = arith.constant 0 : i32
    %c0_i32_1 = arith.constant 0 : i32
    return %c0_i32, %c0_i32_0 : i32, i32
  }
  func.func @transform_3(%arg0: i32) -> (i32, i32) {
    %c0_i32 = arith.constant 0 : i32
    %c0_i32_0 = arith.constant 0 : i32
    %c0_i32_1 = arith.constant 0 : i32
    return %c0_i32, %c0_i32_0 : i32, i32
  }
  func.func @transform_4(%arg0: i32) -> (i32, i32) {
    %c0_i32 = arith.constant 0 : i32
    %c0_i32_0 = arith.constant 0 : i32
    %c0_i32_1 = arith.constant 0 : i32
    return %c0_i32, %c0_i32_0 : i32, i32
  }
  func.func @transform_5(%arg0: i32) -> (i32, i32) {
    %c0_i32 = arith.constant 0 : i32
    %c0_i32_0 = arith.constant 0 : i32
    return %arg0, %c0_i32 : i32, i32
  }
}

module attributes {stable_mosaic.version = 11 : i64} {
  func.func @decoder_kernel(%arg0: i32, %arg1: memref<8x32xbf16, #tpu.memory_space<vmem>>, %arg2: memref<32x256xbf16, #tpu.memory_space<vmem>>, %arg3: memref<1x256xf32, #tpu.memory_space<vmem>>, %arg4: memref<256x512xbf16, #tpu.memory_space<vmem>>, %arg5: memref<1x512xf32, #tpu.memory_space<vmem>>, %arg6: memref<8x512xf32, #tpu.memory_space<vmem>>) attributes {dimension_semantics = [#tpu.dimension_semantics<parallel>], iteration_bounds = array<i64: 1>, scalar_prefetch = 0 : i64, scratch_operands = 0 : i64, tpu.core_type = #tpu.core_type<tc>, window_params = [{transform_indices = @transform_0, window_bounds = array<i64: 8, 32>}, {pipeline_mode = #tpu.pipeline_mode<synchronous>, transform_indices = @transform_1, window_bounds = array<i64: 32, 256>}, {pipeline_mode = #tpu.pipeline_mode<synchronous>, transform_indices = @transform_2, window_bounds = array<i64: 1, 256>}, {pipeline_mode = #tpu.pipeline_mode<synchronous>, transform_indices = @transform_3, window_bounds = array<i64: 256, 512>}, {pipeline_mode = #tpu.pipeline_mode<synchronous>, transform_indices = @transform_4, window_bounds = array<i64: 1, 512>}, {transform_indices = @transform_5, window_bounds = array<i64: 8, 512>}]} {
    %c0 = arith.constant 0 : index
    %c0_0 = arith.constant 0 : index
    %0 = vector.load %arg1[%c0, %c0_0] : memref<8x32xbf16, #tpu.memory_space<vmem>>, vector<8x32xbf16>
    %c0_1 = arith.constant 0 : index
    %c0_2 = arith.constant 0 : index
    %1 = vector.load %arg2[%c0_1, %c0_2] : memref<32x256xbf16, #tpu.memory_space<vmem>>, vector<32x256xbf16>
    %cst = arith.constant dense<0.000000e+00> : vector<8x256xf32>
    %2 = tpu.matmul %0, %1, %cst {dimension_numbers = #tpu.dot_dimension_numbers<[1], [0], [0], [1], [0, 0, 1, 1], [], []>} : vector<8x32xbf16>, vector<32x256xbf16>, vector<8x256xf32> -> vector<8x256xf32>
    %c0_3 = arith.constant 0 : index
    %c0_4 = arith.constant 0 : index
    %3 = vector.load %arg3[%c0_3, %c0_4] : memref<1x256xf32, #tpu.memory_space<vmem>>, vector<1x256xf32>
    %4 = vector.broadcast %3 : vector<1x256xf32> to vector<8x256xf32>
    %5 = arith.addf %2, %4 : vector<8x256xf32>
    %cst_5 = arith.constant 0.000000e+00 : f32
    %6 = vector.broadcast %cst_5 : f32 to vector<8x256xf32>
    %7 = arith.maximumf %5, %6 : vector<8x256xf32>
    %8 = arith.truncf %7 : vector<8x256xf32> to vector<8x256xbf16>
    %c0_6 = arith.constant 0 : index
    %c0_7 = arith.constant 0 : index
    %9 = vector.load %arg4[%c0_6, %c0_7] : memref<256x512xbf16, #tpu.memory_space<vmem>>, vector<256x512xbf16>
    %cst_8 = arith.constant dense<0.000000e+00> : vector<8x512xf32>
    %10 = tpu.matmul %8, %9, %cst_8 {dimension_numbers = #tpu.dot_dimension_numbers<[1], [0], [0], [1], [0, 0, 1, 1], [], []>} : vector<8x256xbf16>, vector<256x512xbf16>, vector<8x512xf32> -> vector<8x512xf32>
    %c0_9 = arith.constant 0 : index
    %c0_10 = arith.constant 0 : index
    %11 = vector.load %arg5[%c0_9, %c0_10] : memref<1x512xf32, #tpu.memory_space<vmem>>, vector<1x512xf32>
    %12 = vector.broadcast %11 : vector<1x512xf32> to vector<8x512xf32>
    %13 = arith.addf %10, %12 : vector<8x512xf32>
    %c0_11 = arith.constant 0 : index
    %c0_12 = arith.constant 0 : index
    %14 = vector.load %arg6[%c0_11, %c0_12] : memref<8x512xf32, #tpu.memory_space<vmem>>, vector<8x512xf32>
    tpu.vector_store %arg6[%c0_11, %c0_12], %13 {strides = array<i32>} : memref<8x512xf32, #tpu.memory_space<vmem>>, vector<8x512xf32>,
    return
  }
  func.func @transform_0(%arg0: i32) -> (i32, i32) {
    %c0_i32 = arith.constant 0 : i32
    %c0_i32_0 = arith.constant 0 : i32
    return %arg0, %c0_i32 : i32, i32
  }
  func.func @transform_1(%arg0: i32) -> (i32, i32) {
    %c0_i32 = arith.constant 0 : i32
    %c0_i32_0 = arith.constant 0 : i32
    %c0_i32_1 = arith.constant 0 : i32
    return %c0_i32, %c0_i32_0 : i32, i32
  }
  func.func @transform_2(%arg0: i32) -> (i32, i32) {
    %c0_i32 = arith.constant 0 : i32
    %c0_i32_0 = arith.constant 0 : i32
    %c0_i32_1 = arith.constant 0 : i32
    return %c0_i32, %c0_i32_0 : i32, i32
  }
  func.func @transform_3(%arg0: i32) -> (i32, i32) {
    %c0_i32 = arith.constant 0 : i32
    %c0_i32_0 = arith.constant 0 : i32
    %c0_i32_1 = arith.constant 0 : i32
    return %c0_i32, %c0_i32_0 : i32, i32
  }
  func.func @transform_4(%arg0: i32) -> (i32, i32) {
    %c0_i32 = arith.constant 0 : i32
    %c0_i32_0 = arith.constant 0 : i32
    %c0_i32_1 = arith.constant 0 : i32
    return %c0_i32, %c0_i32_0 : i32, i32
  }
  func.func @transform_5(%arg0: i32) -> (i32, i32) {
    %c0_i32 = arith.constant 0 : i32
    %c0_i32_0 = arith.constant 0 : i32
    return %arg0, %c0_i32 : i32, i32
  }
}

</mosaic_0001>

<llo_original>
// kernel: _decoder_call.1
$region0: #{_decoder_call.1}
  #allocation0 [shape = 'u32[]', space=smem, size = 0x4, offset = 0x4, fixed_abs, tag = 'smem constant byte address 0x4 - core index']
  #allocation1 [shape = 'u32[144,128]{1,0:T(1,128)}', space=vmem, size = 0x12000, scoped, tag = 'internal scratch']
  %s0 = inlined_call_operand.vmem [shape: bf16[8,32], index: 0, kind: input, shape index: {}]
  %s1 = inlined_call_operand.vmem [shape: bf16[32,256], index: 1, kind: input, shape index: {}]
  %s2 = inlined_call_operand.vmem [shape: f32[1,256], index: 2, kind: input, shape index: {}]
  %s3 = inlined_call_operand.vmem [shape: bf16[256,512], index: 3, kind: input, shape index: {}]
  %s4 = inlined_call_operand.vmem [shape: f32[1,512], index: 4, kind: input, shape index: {}]
  %s5 = inlined_call_operand.hbm [shape: f32[8,512], index: 5, kind: output, shape index: {}]
  %s6 = sld [smem:[#allocation0]]
  $region30: #{_decoder_call.1} parent=0
    _
  %s8 = ssub.s32 1, %s6
  %s9 = scalar_select 0, %s8, %s6
  $region1: #{_decoder_call.1} parent=0
    #allocation2 [shape = 'u8[16384]{0}', space=vmem, size = 0x4000, scoped, tag = 'output window, operand 0, single buffered']
    #allocation3 [shape = 's32[1]{0}', space=sflag, size = 0x4, scoped, tag = 'scoped memory for _decoder_call.1']
    %10 = vsyncpa [#allocation3], 0
    // Predicated region
    $region2: #{_decoder_call.1} parent=1 // pred_check
      _
    $region3: #{_decoder_call.1} parent=1 // pred_check_branch
      %12 = sbr.rel (0) target = $region5
    $region4: #{_decoder_call.1} parent=1 // pred_region
      _
    $region5: #{_decoder_call.1} parent=1 // pred_fallthru
      _
    // Predicated region
    $region6: #{_decoder_call.1} parent=1 // pred_check
      _
    $region7: #{_decoder_call.1} parent=1 // pred_check_branch
      %14 = sbr.rel (0) target = $region9
    $region8: #{_decoder_call.1} parent=1 // pred_region
      _
    $region9: #{_decoder_call.1} parent=1 // pred_fallthru
      _
    // Predicated region
    $region10: #{_decoder_call.1} parent=1 // pred_check
      _
    $region11: #{_decoder_call.1} parent=1 // pred_check_branch
      %16 = sbr.rel (0) target = $region13
    $region12: #{_decoder_call.1} parent=1 // pred_region
      _
    $region13: #{_decoder_call.1} parent=1 // pred_fallthru
      _
    // Predicated region
    $region14: #{_decoder_call.1} parent=1 // pred_check
      _
    $region15: #{_decoder_call.1} parent=1 // pred_check_branch
      %18 = sbr.rel (0) target = $region17
    $region16: #{_decoder_call.1} parent=1 // pred_region
      _
    $region17: #{_decoder_call.1} parent=1 // pred_fallthru
      _
    // Predicated region
    $region18: #{_decoder_call.1} parent=1 // pred_check
      _
    $region19: #{_decoder_call.1} parent=1 // pred_check_branch
      %20 = sbr.rel (0) target = $region21
    $region20: #{_decoder_call.1} parent=1 // pred_region
      _
    $region21: #{_decoder_call.1} parent=1 // pred_fallthru
      _
    %v22 = vld [vmem:[%s0] sm:$0xf]
    %v23 = vld [vmem:[%s1] sm:$0xff]
    %v24 = vld [vmem:[%s1 + $0x8] sm:$0xff]
    %v25 = vld [vmem:[%s1 + $0x10] sm:$0xff]
    %v26 = vld [vmem:[%s1 + $0x18] sm:$0xff]
    %v27 = vld [vmem:[%s2] sm:$0x3]
    %v29 = vlaneseq
    %v30 = vshrl.u32 %v29, 7
    %v31 = vsub.s32 0, %v30
    %v32 = vrot.slane %v27, %v31
    %v33 = vlaneseq
    %v34 = vshrl.u32 %v33, 7
    %v35 = vsub.s32 1, %v34
    %v36 = vrot.slane %v27, %v35
    %v43 = vunpack.c.l.b16 %v23
    %v44 = vunpack.c.h.b16 %v23
    %v45 = vunpack.c.l.b16 %v24
    %v46 = vunpack.c.h.b16 %v24
    %v47 = vunpack.c.l.b16 %v25
    %v48 = vunpack.c.h.b16 %v25
    %v49 = vunpack.c.l.b16 %v26
    %v50 = vunpack.c.h.b16 %v26
    %v51 = vpack.c.b16 %v45, %v43
    %v52 = vpack.c.b16 %v46, %v44
    %v53 = vpack.c.b16 %v49, %v47
    %v54 = vpack.c.b16 %v50, %v48
    %vm59 = vcmask 261120
    %v61 = vsel %vm59, %v22, 0
    %63 = vmatprep.subr.bf16.mxu0 0
    %64 = vmatpush1.bf16.msra.mxu0 0
    %65 = vmatprep.subr.bf16.mxu0 0
    %66 = vmatpush1.bf16.msra.mxu0 0
    %67 = vmatprep.subr.bf16.mxu0 0
    %68 = vmatpush1.bf16.msra.mxu0 0
    %69 = vmatprep.subr.bf16.mxu0 0
    %70 = vmatpush1.bf16.msra.mxu0 0
    %71 = vmatprep.subr.bf16.mxu0 0
    %72 = vmatpush1.bf16.msra.mxu0 0
    %73 = vmatprep.subr.bf16.mxu0 0
    %74 = vmatpush1.bf16.msra.mxu0 0
    %75 = vmatprep.subr.bf16.mxu0 %v54
    %76 = vmatpush1.bf16.msra.mxu0 %v53
    %77 = vmatprep.subr.bf16.mxu0 %v52
    %78 = vmatpush1.bf16.msra.mxu0 %v51
    %79 = vmatprep.subr.bf16.mxu0 0
    %80 = vmatpush2.bf16.msra.mxu0 0
    %81 = vmatprep.subr.bf16.mxu0 0
    %82 = vmatpush2.bf16.msra.mxu0 0
    %83 = vmatprep.subr.bf16.mxu0 0
    %84 = vmatpush2.bf16.msra.mxu0 0
    %85 = vmatprep.subr.bf16.mxu0 0
    %86 = vmatpush2.bf16.msra.mxu0 0
    %87 = vmatprep.subr.bf16.mxu0 0
    %88 = vmatpush2.bf16.msra.mxu0 0
    %89 = vmatprep.subr.bf16.mxu0 0
    %90 = vmatpush2.bf16.msra.mxu0 0
    %91 = vmatprep.subr.bf16.mxu0 0
    %92 = vmatpush2.bf16.msra.mxu0 0
    %93 = vmatprep.subr.bf16.mxu0 0
    %94 = vmatpush2.bf16.msra.mxu0 0
    %95 = vmatprep.mubr.bf16.mxu0 0
    %96 = vmatmul.mubr.bf16.gmra.mxu0 %v61
    %v97 = vpop.f32.mrf.mxu0
    %v98 = vadd.f32 %v32, %v97
    %v99 = vpop.f32.mrf.mxu0
    %v100 = vadd.f32 %v36, %v99
    %v101 = vpop.f32.mrf.mxu0
    %v102 = vpop.f32.mrf.mxu0
    %103 = vdwg.mxu0
    %v104 = vmax.f32 %v98, 0.0
    %v105 = vmax.f32 %v100, 0.0
    %v106 = vpack.c.bf16 %v104, %v104
    %v107 = vpack.c.bf16 %v105, %v105
    %v108 = vld [vmem:[%s3] sm:$0xff]
    %v109 = vld [vmem:[%s3 + $0x8] sm:$0xff]
    %v110 = vld [vmem:[%s3 + $0x10] sm:$0xff]
    %v111 = vld [vmem:[%s3 + $0x18] sm:$0xff]
    %v112 = vld [vmem:[%s3 + $0x20] sm:$0xff]
    %v113 = vld [vmem:[%s3 + $0x28] sm:$0xff]
    %v114 = vld [vmem:[%s3 + $0x30] sm:$0xff]
    %v115 = vld [vmem:[%s3 + $0x38] sm:$0xff]
    %v116 = vld [vmem:[%s3 + $0x40] sm:$0xff]
    %v117 = vld [vmem:[%s3 + $0x48] sm:$0xff]
    %v118 = vld [vmem:[%s3 + $0x50] sm:$0xff]
    %v119 = vld [vmem:[%s3 + $0x58] sm:$0xff]
    %v120 = vld [vmem:[%s3 + $0x60] sm:$0xff]
    %v121 = vld [vmem:[%s3 + $0x68] sm:$0xff]
    %v122 = vld [vmem:[%s3 + $0x70] sm:$0xff]
    %v123 = vld [vmem:[%s3 + $0x78] sm:$0xff]
    %v124 = vld [vmem:[%s3 + $0x80] sm:$0xff]
    %v125 = vld [vmem:[%s3 + $0x88] sm:$0xff]
    %v126 = vld [vmem:[%s3 + $0x90] sm:$0xff]
    %v127 = vld [vmem:[%s3 + $0x98] sm:$0xff]
    %v128 = vld [vmem:[%s3 + $0xa0] sm:$0xff]
    %v129 = vld [vmem:[%s3 + $0xa8] sm:$0xff]
    %v130 = vld [vmem:[%s3 + $0xb0] sm:$0xff]
    %v131 = vld [vmem:[%s3 + $0xb8] sm:$0xff]
    %v132 = vld [vmem:[%s3 + $0xc0] sm:$0xff]
    %v133 = vld [vmem:[%s3 + $0xc8] sm:$0xff]
    %v134 = vld [vmem:[%s3 + $0xd0] sm:$0xff]
    %v135 = vld [vmem:[%s3 + $0xd8] sm:$0xff]
    %v136 = vld [vmem:[%s3 + $0xe0] sm:$0xff]
    %v137 = vld [vmem:[%s3 + $0xe8] sm:$0xff]
    %v138 = vld [vmem:[%s3 + $0xf0] sm:$0xff]
    %v139 = vld [vmem:[%s3 + $0xf8] sm:$0xff]
    %v140 = vld [vmem:[%s3 + $0x100] sm:$0xff]
    %v141 = vld [vmem:[%s3 + $0x108] sm:$0xff]
    %v142 = vld [vmem:[%s3 + $0x110] sm:$0xff]
    %v143 = vld [vmem:[%s3 + $0x118] sm:$0xff]
    %v144 = vld [vmem:[%s3 + $0x120] sm:$0xff]
    %v145 = vld [vmem:[%s3 + $0x128] sm:$0xff]
    %v146 = vld [vmem:[%s3 + $0x130] sm:$0xff]
    %v147 = vld [vmem:[%s3 + $0x138] sm:$0xff]
    %v148 = vld [vmem:[%s3 + $0x140] sm:$0xff]
    %v149 = vld [vmem:[%s3 + $0x148] sm:$0xff]
    %v150 = vld [vmem:[%s3 + $0x150] sm:$0xff]
    %v151 = vld [vmem:[%s3 + $0x158] sm:$0xff]
    %v152 = vld [vmem:[%s3 + $0x160] sm:$0xff]
    %v153 = vld [vmem:[%s3 + $0x168] sm:$0xff]
    %v154 = vld [vmem:[%s3 + $0x170] sm:$0xff]
    %v155 = vld [vmem:[%s3 + $0x178] sm:$0xff]
    %v156 = vld [vmem:[%s3 + $0x180] sm:$0xff]
    %v157 = vld [vmem:[%s3 + $0x188] sm:$0xff]
    %v158 = vld [vmem:[%s3 + $0x190] sm:$0xff]
    %v159 = vld [vmem:[%s3 + $0x198] sm:$0xff]
    %v160 = vld [vmem:[%s3 + $0x1a0] sm:$0xff]
    %v161 = vld [vmem:[%s3 + $0x1a8] sm:$0xff]
    %v162 = vld [vmem:[%s3 + $0x1b0] sm:$0xff]
    %v163 = vld [vmem:[%s3 + $0x1b8] sm:$0xff]
    %v164 = vld [vmem:[%s3 + $0x1c0] sm:$0xff]
    %v165 = vld [vmem:[%s3 + $0x1c8] sm:$0xff]
    %v166 = vld [vmem:[%s3 + $0x1d0] sm:$0xff]
    %v167 = vld [vmem:[%s3 + $0x1d8] sm:$0xff]
    %v168 = vld [vmem:[%s3 + $0x1e0] sm:$0xff]
    %v169 = vld [vmem:[%s3 + $0x1e8] sm:$0xff]
    %v170 = vld [vmem:[%s3 + $0x1f0] sm:$0xff]
    %v171 = vld [vmem:[%s3 + $0x1f8] sm:$0xff]
    %v172 = vld [vmem:[%s4] sm:$0xf]
    %v174 = vlaneseq
    %v175 = vshrl.u32 %v174, 7
    %v176 = vsub.s32 0, %v175
    %v177 = vrot.slane %v172, %v176
    %v178 = vlaneseq
    %v179 = vshrl.u32 %v178, 7
    %v180 = vsub.s32 1, %v179
    %v181 = vrot.slane %v172, %v180
    %v182 = vlaneseq
    %v183 = vshrl.u32 %v182, 7
    %v184 = vsub.s32 2, %v183
    %v185 = vrot.slane %v172, %v184
    %v186 = vlaneseq
    %v187 = vshrl.u32 %v186, 7
    %v188 = vsub.s32 3, %v187
    %v189 = vrot.slane %v172, %v188
    %v258 = vunpack.c.l.b16 %v108
    %v259 = vunpack.c.h.b16 %v108
    %v260 = vunpack.c.l.b16 %v109
    %v261 = vunpack.c.h.b16 %v109
    %v262 = vunpack.c.l.b16 %v110
    %v263 = vunpack.c.h.b16 %v110
    %v264 = vunpack.c.l.b16 %v111
    %v265 = vunpack.c.h.b16 %v111
    %v266 = vunpack.c.l.b16 %v112
    %v267 = vunpack.c.h.b16 %v112
    %v268 = vunpack.c.l.b16 %v113
    %v269 = vunpack.c.h.b16 %v113
    %v270 = vunpack.c.l.b16 %v114
    %v271 = vunpack.c.h.b16 %v114
    %v272 = vunpack.c.l.b16 %v115
    %v273 = vunpack.c.h.b16 %v115
    %v274 = vunpack.c.l.b16 %v116
    %v275 = vunpack.c.h.b16 %v116
    %v276 = vunpack.c.l.b16 %v117
    %v277 = vunpack.c.h.b16 %v117
    %v278 = vunpack.c.l.b16 %v118
    %v279 = vunpack.c.h.b16 %v118
    %v280 = vunpack.c.l.b16 %v119
    %v281 = vunpack.c.h.b16 %v119
    %v282 = vunpack.c.l.b16 %v120
    %v283 = vunpack.c.h.b16 %v120
    %v284 = vunpack.c.l.b16 %v121
    %v285 = vunpack.c.h.b16 %v121
    %v286 = vunpack.c.l.b16 %v122
    %v287 = vunpack.c.h.b16 %v122
    %v288 = vunpack.c.l.b16 %v123
    %v289 = vunpack.c.h.b16 %v123
    %v290 = vunpack.c.l.b16 %v124
    %v291 = vunpack.c.h.b16 %v124
    %v292 = vunpack.c.l.b16 %v125
    %v293 = vunpack.c.h.b16 %v125
    %v294 = vunpack.c.l.b16 %v126
    %v295 = vunpack.c.h.b16 %v126
    %v296 = vunpack.c.l.b16 %v127
    %v297 = vunpack.c.h.b16 %v127
    %v298 = vunpack.c.l.b16 %v128
    %v299 = vunpack.c.h.b16 %v128
    %v300 = vunpack.c.l.b16 %v129
    %v301 = vunpack.c.h.b16 %v129
    %v302 = vunpack.c.l.b16 %v130
    %v303 = vunpack.c.h.b16 %v130
    %v304 = vunpack.c.l.b16 %v131
    %v305 = vunpack.c.h.b16 %v131
    %v306 = vunpack.c.l.b16 %v132
    %v307 = vunpack.c.h.b16 %v132
    %v308 = vunpack.c.l.b16 %v133
    %v309 = vunpack.c.h.b16 %v133
    %v310 = vunpack.c.l.b16 %v134
    %v311 = vunpack.c.h.b16 %v134
    %v312 = vunpack.c.l.b16 %v135
    %v313 = vunpack.c.h.b16 %v135
    %v314 = vunpack.c.l.b16 %v136
    %v315 = vunpack.c.h.b16 %v136
    %v316 = vunpack.c.l.b16 %v137
    %v317 = vunpack.c.h.b16 %v137
    %v318 = vunpack.c.l.b16 %v138
    %v319 = vunpack.c.h.b16 %v138
    %v320 = vunpack.c.l.b16 %v139
    %v321 = vunpack.c.h.b16 %v139
    %v322 = vunpack.c.l.b16 %v140
    %v323 = vunpack.c.h.b16 %v140
    %v324 = vunpack.c.l.b16 %v141
    %v325 = vunpack.c.h.b16 %v141
    %v326 = vunpack.c.l.b16 %v142
    %v327 = vunpack.c.h.b16 %v142
    %v328 = vunpack.c.l.b16 %v143
    %v329 = vunpack.c.h.b16 %v143
    %v330 = vunpack.c.l.b16 %v144
    %v331 = vunpack.c.h.b16 %v144
    %v332 = vunpack.c.l.b16 %v145
    %v333 = vunpack.c.h.b16 %v145
    %v334 = vunpack.c.l.b16 %v146
    %v335 = vunpack.c.h.b16 %v146
    %v336 = vunpack.c.l.b16 %v147
    %v337 = vunpack.c.h.b16 %v147
    %v338 = vunpack.c.l.b16 %v148
    %v339 = vunpack.c.h.b16 %v148
    %v340 = vunpack.c.l.b16 %v149
    %v341 = vunpack.c.h.b16 %v149
    %v342 = vunpack.c.l.b16 %v150
    %v343 = vunpack.c.h.b16 %v150
    %v344 = vunpack.c.l.b16 %v151
    %v345 = vunpack.c.h.b16 %v151
    %v346 = vunpack.c.l.b16 %v152
    %v347 = vunpack.c.h.b16 %v152
    %v348 = vunpack.c.l.b16 %v153
    %v349 = vunpack.c.h.b16 %v153
    %v350 = vunpack.c.l.b16 %v154
    %v351 = vunpack.c.h.b16 %v154
    %v352 = vunpack.c.l.b16 %v155
    %v353 = vunpack.c.h.b16 %v155
    %v354 = vunpack.c.l.b16 %v156
    %v355 = vunpack.c.h.b16 %v156
    %v356 = vunpack.c.l.b16 %v157
    %v357 = vunpack.c.h.b16 %v157
    %v358 = vunpack.c.l.b16 %v158
    %v359 = vunpack.c.h.b16 %v158
    %v360 = vunpack.c.l.b16 %v159
    %v361 = vunpack.c.h.b16 %v159
    %v362 = vunpack.c.l.b16 %v160
    %v363 = vunpack.c.h.b16 %v160
    %v364 = vunpack.c.l.b16 %v161
    %v365 = vunpack.c.h.b16 %v161
    %v366 = vunpack.c.l.b16 %v162
    %v367 = vunpack.c.h.b16 %v162
    %v368 = vunpack.c.l.b16 %v163
    %v369 = vunpack.c.h.b16 %v163
    %v370 = vunpack.c.l.b16 %v164
    %v371 = vunpack.c.h.b16 %v164
    %v372 = vunpack.c.l.b16 %v165
    %v373 = vunpack.c.h.b16 %v165
    %v374 = vunpack.c.l.b16 %v166
    %v375 = vunpack.c.h.b16 %v166
    %v376 = vunpack.c.l.b16 %v167
    %v377 = vunpack.c.h.b16 %v167
    %v378 = vunpack.c.l.b16 %v168
    %v379 = vunpack.c.h.b16 %v168
    %v380 = vunpack.c.l.b16 %v169
    %v381 = vunpack.c.h.b16 %v169
    %v382 = vunpack.c.l.b16 %v170
    %v383 = vunpack.c.h.b16 %v170
    %v384 = vunpack.c.l.b16 %v171
    %v385 = vunpack.c.h.b16 %v171
    %v386 = vpack.c.b16 %v262, %v258
    %v387 = vpack.c.b16 %v263, %v259
    %v388 = vpack.c.b16 %v264, %v260
    %v389 = vpack.c.b16 %v265, %v261
    %v390 = vpack.c.b16 %v270, %v266
    %v391 = vpack.c.b16 %v271, %v267
    %v392 = vpack.c.b16 %v272, %v268
    %v393 = vpack.c.b16 %v273, %v269
    %v394 = vpack.c.b16 %v278, %v274
    %v395 = vpack.c.b16 %v279, %v275
    %v396 = vpack.c.b16 %v280, %v276
    %v397 = vpack.c.b16 %v281, %v277
    %v398 = vpack.c.b16 %v286, %v282
    %v399 = vpack.c.b16 %v287, %v283
    %v400 = vpack.c.b16 %v288, %v284
    %v401 = vpack.c.b16 %v289, %v285
    %v402 = vpack.c.b16 %v294, %v290
    %v403 = vpack.c.b16 %v295, %v291
    %v404 = vpack.c.b16 %v296, %v292
    %v405 = vpack.c.b16 %v297, %v293
    %v406 = vpack.c.b16 %v302, %v298
    %v407 = vpack.c.b16 %v303, %v299
    %v408 = vpack.c.b16 %v304, %v300
    %v409 = vpack.c.b16 %v305, %v301
    %v410 = vpack.c.b16 %v310, %v306
    %v411 = vpack.c.b16 %v311, %v307
    %v412 = vpack.c.b16 %v312, %v308
    %v413 = vpack.c.b16 %v313, %v309
    %v414 = vpack.c.b16 %v318, %v314
    %v415 = vpack.c.b16 %v319, %v315
    %v416 = vpack.c.b16 %v320, %v316
    %v417 = vpack.c.b16 %v321, %v317
    %v418 = vpack.c.b16 %v326, %v322
    %v419 = vpack.c.b16 %v327, %v323
    %v420 = vpack.c.b16 %v328, %v324
    %v421 = vpack.c.b16 %v329, %v325
    %v422 = vpack.c.b16 %v334, %v330
    %v423 = vpack.c.b16 %v335, %v331
    %v424 = vpack.c.b16 %v336, %v332
    %v425 = vpack.c.b16 %v337, %v333
    %v426 = vpack.c.b16 %v342, %v338
    %v427 = vpack.c.b16 %v343, %v339
    %v428 = vpack.c.b16 %v344, %v340
    %v429 = vpack.c.b16 %v345, %v341
    %v430 = vpack.c.b16 %v350, %v346
    %v431 = vpack.c.b16 %v351, %v347
    %v432 = vpack.c.b16 %v352, %v348
    %v433 = vpack.c.b16 %v353, %v349
    %v434 = vpack.c.b16 %v358, %v354
    %v435 = vpack.c.b16 %v359, %v355
    %v436 = vpack.c.b16 %v360, %v356
    %v437 = vpack.c.b16 %v361, %v357
    %v438 = vpack.c.b16 %v366, %v362
    %v439 = vpack.c.b16 %v367, %v363
    %v440 = vpack.c.b16 %v368, %v364
    %v441 = vpack.c.b16 %v369, %v365
    %v442 = vpack.c.b16 %v374, %v370
    %v443 = vpack.c.b16 %v375, %v371
    %v444 = vpack.c.b16 %v376, %v372
    %v445 = vpack.c.b16 %v377, %v373
    %v446 = vpack.c.b16 %v382, %v378
    %v447 = vpack.c.b16 %v383, %v379
    %v448 = vpack.c.b16 %v384, %v380
    %v449 = vpack.c.b16 %v385, %v381
    %514 = vmatprep.subr.bf16.mxu0 %v415
    %515 = vmatpush1.bf16.msra.mxu0 %v414
    %516 = vmatprep.subr.bf16.mxu0 %v411
    %517 = vmatpush1.bf16.msra.mxu0 %v410
    %518 = vmatprep.subr.bf16.mxu0 %v407
    %519 = vmatpush1.bf16.msra.mxu0 %v406
    %520 = vmatprep.subr.bf16.mxu0 %v403
    %521 = vmatpush1.bf16.msra.mxu0 %v402
    %522 = vmatprep.subr.bf16.mxu0 %v399
    %523 = vmatpush1.bf16.msra.mxu0 %v398
    %524 = vmatprep.subr.bf16.mxu0 %v395
    %525 = vmatpush1.bf16.msra.mxu0 %v394
    %526 = vmatprep.subr.bf16.mxu0 %v391
    %527 = vmatpush1.bf16.msra.mxu0 %v390
    %528 = vmatprep.subr.bf16.mxu0 %v387
    %529 = vmatpush1.bf16.msra.mxu0 %v386
    %530 = vmatprep.subr.bf16.mxu0 %v447
    %531 = vmatpush2.bf16.msra.mxu0 %v446
    %532 = vmatprep.subr.bf16.mxu0 %v443
    %533 = vmatpush2.bf16.msra.mxu0 %v442
    %534 = vmatprep.subr.bf16.mxu0 %v439
    %535 = vmatpush2.bf16.msra.mxu0 %v438
    %536 = vmatprep.subr.bf16.mxu0 %v435
    %537 = vmatpush2.bf16.msra.mxu0 %v434
    %538 = vmatprep.subr.bf16.mxu0 %v431
    %539 = vmatpush2.bf16.msra.mxu0 %v430
    %540 = vmatprep.subr.bf16.mxu0 %v427
    %541 = vmatpush2.bf16.msra.mxu0 %v426
    %542 = vmatprep.subr.bf16.mxu0 %v423
    %543 = vmatpush2.bf16.msra.mxu0 %v422
    %544 = vmatprep.subr.bf16.mxu0 %v419
    %545 = vmatpush2.bf16.msra.mxu0 %v418
    %546 = vmatprep.mubr.bf16.mxu0 %v107
    %547 = vmatmul.mubr.bf16.gmra.mxu0 %v106
    %v548 = vpop.f32.mrf.mxu0
    %v549 = vadd.f32 %v177, %v548
    %v550 = vpop.f32.mrf.mxu0
    %v551 = vadd.f32 %v181, %v550
    %v552 = vpop.f32.mrf.mxu0
    %v553 = vpop.f32.mrf.mxu0
    %554 = vdwg.mxu0
    %555 = vmatprep.subr.bf16.mxu0 %v417
    %556 = vmatpush1.bf16.msra.mxu0 %v416
    %557 = vmatprep.subr.bf16.mxu0 %v413
    %558 = vmatpush1.bf16.msra.mxu0 %v412
    %559 = vmatprep.subr.bf16.mxu0 %v409
    %560 = vmatpush1.bf16.msra.mxu0 %v408
    %561 = vmatprep.subr.bf16.mxu0 %v405
    %562 = vmatpush1.bf16.msra.mxu0 %v404
    %563 = vmatprep.subr.bf16.mxu0 %v401
    %564 = vmatpush1.bf16.msra.mxu0 %v400
    %565 = vmatprep.subr.bf16.mxu0 %v397
    %566 = vmatpush1.bf16.msra.mxu0 %v396
    %567 = vmatprep.subr.bf16.mxu0 %v393
    %568 = vmatpush1.bf16.msra.mxu0 %v392
    %569 = vmatprep.subr.bf16.mxu0 %v389
    %570 = vmatpush1.bf16.msra.mxu0 %v388
    %571 = vmatprep.subr.bf16.mxu0 %v449
    %572 = vmatpush2.bf16.msra.mxu0 %v448
    %573 = vmatprep.subr.bf16.mxu0 %v445
    %574 = vmatpush2.bf16.msra.mxu0 %v444
    %575 = vmatprep.subr.bf16.mxu0 %v441
    %576 = vmatpush2.bf16.msra.mxu0 %v440
    %577 = vmatprep.subr.bf16.mxu0 %v437
    %578 = vmatpush2.bf16.msra.mxu0 %v436
    %579 = vmatprep.subr.bf16.mxu0 %v433
    %580 = vmatpush2.bf16.msra.mxu0 %v432
    %581 = vmatprep.subr.bf16.mxu0 %v429
    %582 = vmatpush2.bf16.msra.mxu0 %v428
    %583 = vmatprep.subr.bf16.mxu0 %v425
    %584 = vmatpush2.bf16.msra.mxu0 %v424
    %585 = vmatprep.subr.bf16.mxu0 %v421
    %586 = vmatpush2.bf16.msra.mxu0 %v420
    %587 = vmatprep.mubr.bf16.mxu0 %v107
    %588 = vmatmul.mubr.bf16.gmra.mxu0 %v106
    %v589 = vpop.f32.mrf.mxu0
    %v590 = vadd.f32 %v185, %v589
    %v591 = vpop.f32.mrf.mxu0
    %v592 = vadd.f32 %v189, %v591
    %v593 = vpop.f32.mrf.mxu0
    %v594 = vpop.f32.mrf.mxu0
    %595 = vdwg.mxu0
    %596 = vst [vmem:[#allocation2] sm:$0xff] %v549
    %597 = vst [vmem:[#allocation2 + $0x8] sm:$0xff] %v551
    %598 = vst [vmem:[#allocation2 + $0x10] sm:$0xff] %v590
    %599 = vst [vmem:[#allocation2 + $0x18] sm:$0xff] %v592
    // Predicated region
    $region22: #{_decoder_call.1} parent=1 // pred_check
      _
    $region23: #{_decoder_call.1} parent=1 // pred_check_branch
      %601 = sbr.rel (0) target = $region25
    $region24: #{_decoder_call.1} parent=1 // pred_region
      %s603 = ssub.s32 512, 512
      %604 = vsyncadd [#allocation3], %s603
      %s606 = sshll.u32 [#allocation2], 4
      %s607 = int_to_ptr.vmem [resolvable:$true] %s606
      %609 = dma.vmem_to_hbm [thread:$0]  %s607, 512, %s5, [#allocation3]
    $region25: #{_decoder_call.1} parent=1 // pred_fallthru
      _
    // Predicated region
    $region26: #{_decoder_call.1} parent=1 // pred_check
      _
    $region27: #{_decoder_call.1} parent=1 // pred_check_branch
      %611 = sbr.rel (0) target = $region29
    $region28: #{_decoder_call.1} parent=1 // pred_region
      %612 = dma.done [#allocation3], 512
    $region29: #{_decoder_call.1} parent=1 // pred_fallthru
      _
    %613 = vsyncpa [#allocation3], 1

// kernel: _decoder_call.1
$region0: #{_decoder_call.1}
  #allocation0 [shape = 'u32[]', space=smem, size = 0x4, offset = 0x4, fixed_abs, tag = 'smem constant byte address 0x4 - core index']
  #allocation1 [shape = 'u32[144,128]{1,0:T(1,128)}', space=vmem, size = 0x12000, scoped, tag = 'internal scratch']
  %s0 = inlined_call_operand.vmem [shape: bf16[8,32], index: 0, kind: input, shape index: {}]
  %s1 = inlined_call_operand.vmem [shape: bf16[32,256], index: 1, kind: input, shape index: {}]
  %s2 = inlined_call_operand.vmem [shape: f32[1,256], index: 2, kind: input, shape index: {}]
  %s3 = inlined_call_operand.vmem [shape: bf16[256,512], index: 3, kind: input, shape index: {}]
  %s4 = inlined_call_operand.vmem [shape: f32[1,512], index: 4, kind: input, shape index: {}]
  %s5 = inlined_call_operand.hbm [shape: f32[8,512], index: 5, kind: output, shape index: {}]
  %s6 = sld [smem:[#allocation0]]
  $region30: #{_decoder_call.1} parent=0
    _
  %s8 = ssub.s32 1, %s6
  %s9 = scalar_select 0, %s8, %s6
  $region1: #{_decoder_call.1} parent=0
    #allocation2 [shape = 'u8[16384]{0}', space=vmem, size = 0x4000, scoped, tag = 'output window, operand 0, single buffered']
    #allocation3 [shape = 's32[1]{0}', space=sflag, size = 0x4, scoped, tag = 'scoped memory for _decoder_call.1']
    %10 = vsyncpa [#allocation3], 0
    // Predicated region
    $region2: #{_decoder_call.1} parent=1 // pred_check
      _
    $region3: #{_decoder_call.1} parent=1 // pred_check_branch
      %12 = sbr.rel (0) target = $region5
    $region4: #{_decoder_call.1} parent=1 // pred_region
      _
    $region5: #{_decoder_call.1} parent=1 // pred_fallthru
      _
    // Predicated region
    $region6: #{_decoder_call.1} parent=1 // pred_check
      _
    $region7: #{_decoder_call.1} parent=1 // pred_check_branch
      %14 = sbr.rel (0) target = $region9
    $region8: #{_decoder_call.1} parent=1 // pred_region
      _
    $region9: #{_decoder_call.1} parent=1 // pred_fallthru
      _
    // Predicated region
    $region10: #{_decoder_call.1} parent=1 // pred_check
      _
    $region11: #{_decoder_call.1} parent=1 // pred_check_branch
      %16 = sbr.rel (0) target = $region13
    $region12: #{_decoder_call.1} parent=1 // pred_region
      _
    $region13: #{_decoder_call.1} parent=1 // pred_fallthru
      _
    // Predicated region
    $region14: #{_decoder_call.1} parent=1 // pred_check
      _
    $region15: #{_decoder_call.1} parent=1 // pred_check_branch
      %18 = sbr.rel (0) target = $region17
    $region16: #{_decoder_call.1} parent=1 // pred_region
      _
    $region17: #{_decoder_call.1} parent=1 // pred_fallthru
      _
    // Predicated region
    $region18: #{_decoder_call.1} parent=1 // pred_check
      _
    $region19: #{_decoder_call.1} parent=1 // pred_check_branch
      %20 = sbr.rel (0) target = $region21
    $region20: #{_decoder_call.1} parent=1 // pred_region
      _
    $region21: #{_decoder_call.1} parent=1 // pred_fallthru
      _
    %v22 = vld [vmem:[%s0] sm:$0xf]
    %v23 = vld [vmem:[%s1] sm:$0xff]
    %v24 = vld [vmem:[%s1 + $0x8] sm:$0xff]
    %v25 = vld [vmem:[%s1 + $0x10] sm:$0xff]
    %v26 = vld [vmem:[%s1 + $0x18] sm:$0xff]
    %v27 = vld [vmem:[%s2] sm:$0x3]
    %v29 = vlaneseq
    %v30 = vshrl.u32 %v29, 7
    %v31 = vsub.s32 0, %v30
    %v32 = vrot.slane %v27, %v31
    %v33 = vlaneseq
    %v34 = vshrl.u32 %v33, 7
    %v35 = vsub.s32 1, %v34
    %v36 = vrot.slane %v27, %v35
    %v43 = vunpack.c.l.b16 %v23
    %v44 = vunpack.c.h.b16 %v23
    %v45 = vunpack.c.l.b16 %v24
    %v46 = vunpack.c.h.b16 %v24
    %v47 = vunpack.c.l.b16 %v25
    %v48 = vunpack.c.h.b16 %v25
    %v49 = vunpack.c.l.b16 %v26
    %v50 = vunpack.c.h.b16 %v26
    %v51 = vpack.c.b16 %v45, %v43
    %v52 = vpack.c.b16 %v46, %v44
    %v53 = vpack.c.b16 %v49, %v47
    %v54 = vpack.c.b16 %v50, %v48
    %vm59 = vcmask 261120
    %v61 = vsel %vm59, %v22, 0
    %63 = vmatprep.subr.bf16.mxu0 0
    %64 = vmatpush1.bf16.msra.mxu0 0
    %65 = vmatprep.subr.bf16.mxu0 0
    %66 = vmatpush1.bf16.msra.mxu0 0
    %67 = vmatprep.subr.bf16.mxu0 0
    %68 = vmatpush1.bf16.msra.mxu0 0
    %69 = vmatprep.subr.bf16.mxu0 0
    %70 = vmatpush1.bf16.msra.mxu0 0
    %71 = vmatprep.subr.bf16.mxu0 0
    %72 = vmatpush1.bf16.msra.mxu0 0
    %73 = vmatprep.subr.bf16.mxu0 0
    %74 = vmatpush1.bf16.msra.mxu0 0
    %75 = vmatprep.subr.bf16.mxu0 %v54
    %76 = vmatpush1.bf16.msra.mxu0 %v53
    %77 = vmatprep.subr.bf16.mxu0 %v52
    %78 = vmatpush1.bf16.msra.mxu0 %v51
    %79 = vmatprep.subr.bf16.mxu0 0
    %80 = vmatpush2.bf16.msra.mxu0 0
    %81 = vmatprep.subr.bf16.mxu0 0
    %82 = vmatpush2.bf16.msra.mxu0 0
    %83 = vmatprep.subr.bf16.mxu0 0
    %84 = vmatpush2.bf16.msra.mxu0 0
    %85 = vmatprep.subr.bf16.mxu0 0
    %86 = vmatpush2.bf16.msra.mxu0 0
    %87 = vmatprep.subr.bf16.mxu0 0
    %88 = vmatpush2.bf16.msra.mxu0 0
    %89 = vmatprep.subr.bf16.mxu0 0
    %90 = vmatpush2.bf16.msra.mxu0 0
    %91 = vmatprep.subr.bf16.mxu0 0
    %92 = vmatpush2.bf16.msra.mxu0 0
    %93 = vmatprep.subr.bf16.mxu0 0
    %94 = vmatpush2.bf16.msra.mxu0 0
    %95 = vmatprep.mubr.bf16.mxu0 0
    %96 = vmatmul.mubr.bf16.gmra.mxu0 %v61
    %v97 = vpop.f32.mrf.mxu0
    %v98 = vadd.f32 %v32, %v97
    %v99 = vpop.f32.mrf.mxu0
    %v100 = vadd.f32 %v36, %v99
    %v101 = vpop.f32.mrf.mxu0
    %v102 = vpop.f32.mrf.mxu0
    %103 = vdwg.mxu0
    %v104 = vmax.f32 %v98, 0.0
    %v105 = vmax.f32 %v100, 0.0
    %v106 = vpack.c.bf16 %v104, %v104
    %v107 = vpack.c.bf16 %v105, %v105
    %v108 = vld [vmem:[%s3] sm:$0xff]
    %v109 = vld [vmem:[%s3 + $0x8] sm:$0xff]
    %v110 = vld [vmem:[%s3 + $0x10] sm:$0xff]
    %v111 = vld [vmem:[%s3 + $0x18] sm:$0xff]
    %v112 = vld [vmem:[%s3 + $0x20] sm:$0xff]
    %v113 = vld [vmem:[%s3 + $0x28] sm:$0xff]
    %v114 = vld [vmem:[%s3 + $0x30] sm:$0xff]
    %v115 = vld [vmem:[%s3 + $0x38] sm:$0xff]
    %v116 = vld [vmem:[%s3 + $0x40] sm:$0xff]
    %v117 = vld [vmem:[%s3 + $0x48] sm:$0xff]
    %v118 = vld [vmem:[%s3 + $0x50] sm:$0xff]
    %v119 = vld [vmem:[%s3 + $0x58] sm:$0xff]
    %v120 = vld [vmem:[%s3 + $0x60] sm:$0xff]
    %v121 = vld [vmem:[%s3 + $0x68] sm:$0xff]
    %v122 = vld [vmem:[%s3 + $0x70] sm:$0xff]
    %v123 = vld [vmem:[%s3 + $0x78] sm:$0xff]
    %v124 = vld [vmem:[%s3 + $0x80] sm:$0xff]
    %v125 = vld [vmem:[%s3 + $0x88] sm:$0xff]
    %v126 = vld [vmem:[%s3 + $0x90] sm:$0xff]
    %v127 = vld [vmem:[%s3 + $0x98] sm:$0xff]
    %v128 = vld [vmem:[%s3 + $0xa0] sm:$0xff]
    %v129 = vld [vmem:[%s3 + $0xa8] sm:$0xff]
    %v130 = vld [vmem:[%s3 + $0xb0] sm:$0xff]
    %v131 = vld [vmem:[%s3 + $0xb8] sm:$0xff]
    %v132 = vld [vmem:[%s3 + $0xc0] sm:$0xff]
    %v133 = vld [vmem:[%s3 + $0xc8] sm:$0xff]
    %v134 = vld [vmem:[%s3 + $0xd0] sm:$0xff]
    %v135 = vld [vmem:[%s3 + $0xd8] sm:$0xff]
    %v136 = vld [vmem:[%s3 + $0xe0] sm:$0xff]
    %v137 = vld [vmem:[%s3 + $0xe8] sm:$0xff]
    %v138 = vld [vmem:[%s3 + $0xf0] sm:$0xff]
    %v139 = vld [vmem:[%s3 + $0xf8] sm:$0xff]
    %v140 = vld [vmem:[%s3 + $0x100] sm:$0xff]
    %v141 = vld [vmem:[%s3 + $0x108] sm:$0xff]
    %v142 = vld [vmem:[%s3 + $0x110] sm:$0xff]
    %v143 = vld [vmem:[%s3 + $0x118] sm:$0xff]
    %v144 = vld [vmem:[%s3 + $0x120] sm:$0xff]
    %v145 = vld [vmem:[%s3 + $0x128] sm:$0xff]
    %v146 = vld [vmem:[%s3 + $0x130] sm:$0xff]
    %v147 = vld [vmem:[%s3 + $0x138] sm:$0xff]
    %v148 = vld [vmem:[%s3 + $0x140] sm:$0xff]
    %v149 = vld [vmem:[%s3 + $0x148] sm:$0xff]
    %v150 = vld [vmem:[%s3 + $0x150] sm:$0xff]
    %v151 = vld [vmem:[%s3 + $0x158] sm:$0xff]
    %v152 = vld [vmem:[%s3 + $0x160] sm:$0xff]
    %v153 = vld [vmem:[%s3 + $0x168] sm:$0xff]
    %v154 = vld [vmem:[%s3 + $0x170] sm:$0xff]
    %v155 = vld [vmem:[%s3 + $0x178] sm:$0xff]
    %v156 = vld [vmem:[%s3 + $0x180] sm:$0xff]
    %v157 = vld [vmem:[%s3 + $0x188] sm:$0xff]
    %v158 = vld [vmem:[%s3 + $0x190] sm:$0xff]
    %v159 = vld [vmem:[%s3 + $0x198] sm:$0xff]
    %v160 = vld [vmem:[%s3 + $0x1a0] sm:$0xff]
    %v161 = vld [vmem:[%s3 + $0x1a8] sm:$0xff]
    %v162 = vld [vmem:[%s3 + $0x1b0] sm:$0xff]
    %v163 = vld [vmem:[%s3 + $0x1b8] sm:$0xff]
    %v164 = vld [vmem:[%s3 + $0x1c0] sm:$0xff]
    %v165 = vld [vmem:[%s3 + $0x1c8] sm:$0xff]
    %v166 = vld [vmem:[%s3 + $0x1d0] sm:$0xff]
    %v167 = vld [vmem:[%s3 + $0x1d8] sm:$0xff]
    %v168 = vld [vmem:[%s3 + $0x1e0] sm:$0xff]
    %v169 = vld [vmem:[%s3 + $0x1e8] sm:$0xff]
    %v170 = vld [vmem:[%s3 + $0x1f0] sm:$0xff]
    %v171 = vld [vmem:[%s3 + $0x1f8] sm:$0xff]
    %v172 = vld [vmem:[%s4] sm:$0xf]
    %v174 = vlaneseq
    %v175 = vshrl.u32 %v174, 7
    %v176 = vsub.s32 0, %v175
    %v177 = vrot.slane %v172, %v176
    %v178 = vlaneseq
    %v179 = vshrl.u32 %v178, 7
    %v180 = vsub.s32 1, %v179
    %v181 = vrot.slane %v172, %v180
    %v182 = vlaneseq
    %v183 = vshrl.u32 %v182, 7
    %v184 = vsub.s32 2, %v183
    %v185 = vrot.slane %v172, %v184
    %v186 = vlaneseq
    %v187 = vshrl.u32 %v186, 7
    %v188 = vsub.s32 3, %v187
    %v189 = vrot.slane %v172, %v188
    %v258 = vunpack.c.l.b16 %v108
    %v259 = vunpack.c.h.b16 %v108
    %v260 = vunpack.c.l.b16 %v109
    %v261 = vunpack.c.h.b16 %v109
    %v262 = vunpack.c.l.b16 %v110
    %v263 = vunpack.c.h.b16 %v110
    %v264 = vunpack.c.l.b16 %v111
    %v265 = vunpack.c.h.b16 %v111
    %v266 = vunpack.c.l.b16 %v112
    %v267 = vunpack.c.h.b16 %v112
    %v268 = vunpack.c.l.b16 %v113
    %v269 = vunpack.c.h.b16 %v113
    %v270 = vunpack.c.l.b16 %v114
    %v271 = vunpack.c.h.b16 %v114
    %v272 = vunpack.c.l.b16 %v115
    %v273 = vunpack.c.h.b16 %v115
    %v274 = vunpack.c.l.b16 %v116
    %v275 = vunpack.c.h.b16 %v116
    %v276 = vunpack.c.l.b16 %v117
    %v277 = vunpack.c.h.b16 %v117
    %v278 = vunpack.c.l.b16 %v118
    %v279 = vunpack.c.h.b16 %v118
    %v280 = vunpack.c.l.b16 %v119
    %v281 = vunpack.c.h.b16 %v119
    %v282 = vunpack.c.l.b16 %v120
    %v283 = vunpack.c.h.b16 %v120
    %v284 = vunpack.c.l.b16 %v121
    %v285 = vunpack.c.h.b16 %v121
    %v286 = vunpack.c.l.b16 %v122
    %v287 = vunpack.c.h.b16 %v122
    %v288 = vunpack.c.l.b16 %v123
    %v289 = vunpack.c.h.b16 %v123
    %v290 = vunpack.c.l.b16 %v124
    %v291 = vunpack.c.h.b16 %v124
    %v292 = vunpack.c.l.b16 %v125
    %v293 = vunpack.c.h.b16 %v125
    %v294 = vunpack.c.l.b16 %v126
    %v295 = vunpack.c.h.b16 %v126
    %v296 = vunpack.c.l.b16 %v127
    %v297 = vunpack.c.h.b16 %v127
    %v298 = vunpack.c.l.b16 %v128
    %v299 = vunpack.c.h.b16 %v128
    %v300 = vunpack.c.l.b16 %v129
    %v301 = vunpack.c.h.b16 %v129
    %v302 = vunpack.c.l.b16 %v130
    %v303 = vunpack.c.h.b16 %v130
    %v304 = vunpack.c.l.b16 %v131
    %v305 = vunpack.c.h.b16 %v131
    %v306 = vunpack.c.l.b16 %v132
    %v307 = vunpack.c.h.b16 %v132
    %v308 = vunpack.c.l.b16 %v133
    %v309 = vunpack.c.h.b16 %v133
    %v310 = vunpack.c.l.b16 %v134
    %v311 = vunpack.c.h.b16 %v134
    %v312 = vunpack.c.l.b16 %v135
    %v313 = vunpack.c.h.b16 %v135
    %v314 = vunpack.c.l.b16 %v136
    %v315 = vunpack.c.h.b16 %v136
    %v316 = vunpack.c.l.b16 %v137
    %v317 = vunpack.c.h.b16 %v137
    %v318 = vunpack.c.l.b16 %v138
    %v319 = vunpack.c.h.b16 %v138
    %v320 = vunpack.c.l.b16 %v139
    %v321 = vunpack.c.h.b16 %v139
    %v322 = vunpack.c.l.b16 %v140
    %v323 = vunpack.c.h.b16 %v140
    %v324 = vunpack.c.l.b16 %v141
    %v325 = vunpack.c.h.b16 %v141
    %v326 = vunpack.c.l.b16 %v142
    %v327 = vunpack.c.h.b16 %v142
    %v328 = vunpack.c.l.b16 %v143
    %v329 = vunpack.c.h.b16 %v143
    %v330 = vunpack.c.l.b16 %v144
    %v331 = vunpack.c.h.b16 %v144
    %v332 = vunpack.c.l.b16 %v145
    %v333 = vunpack.c.h.b16 %v145
    %v334 = vunpack.c.l.b16 %v146
    %v335 = vunpack.c.h.b16 %v146
    %v336 = vunpack.c.l.b16 %v147
    %v337 = vunpack.c.h.b16 %v147
    %v338 = vunpack.c.l.b16 %v148
    %v339 = vunpack.c.h.b16 %v148
    %v340 = vunpack.c.l.b16 %v149
    %v341 = vunpack.c.h.b16 %v149
    %v342 = vunpack.c.l.b16 %v150
    %v343 = vunpack.c.h.b16 %v150
    %v344 = vunpack.c.l.b16 %v151
    %v345 = vunpack.c.h.b16 %v151
    %v346 = vunpack.c.l.b16 %v152
    %v347 = vunpack.c.h.b16 %v152
    %v348 = vunpack.c.l.b16 %v153
    %v349 = vunpack.c.h.b16 %v153
    %v350 = vunpack.c.l.b16 %v154
    %v351 = vunpack.c.h.b16 %v154
    %v352 = vunpack.c.l.b16 %v155
    %v353 = vunpack.c.h.b16 %v155
    %v354 = vunpack.c.l.b16 %v156
    %v355 = vunpack.c.h.b16 %v156
    %v356 = vunpack.c.l.b16 %v157
    %v357 = vunpack.c.h.b16 %v157
    %v358 = vunpack.c.l.b16 %v158
    %v359 = vunpack.c.h.b16 %v158
    %v360 = vunpack.c.l.b16 %v159
    %v361 = vunpack.c.h.b16 %v159
    %v362 = vunpack.c.l.b16 %v160
    %v363 = vunpack.c.h.b16 %v160
    %v364 = vunpack.c.l.b16 %v161
    %v365 = vunpack.c.h.b16 %v161
    %v366 = vunpack.c.l.b16 %v162
    %v367 = vunpack.c.h.b16 %v162
    %v368 = vunpack.c.l.b16 %v163
    %v369 = vunpack.c.h.b16 %v163
    %v370 = vunpack.c.l.b16 %v164
    %v371 = vunpack.c.h.b16 %v164
    %v372 = vunpack.c.l.b16 %v165
    %v373 = vunpack.c.h.b16 %v165
    %v374 = vunpack.c.l.b16 %v166
    %v375 = vunpack.c.h.b16 %v166
    %v376 = vunpack.c.l.b16 %v167
    %v377 = vunpack.c.h.b16 %v167
    %v378 = vunpack.c.l.b16 %v168
    %v379 = vunpack.c.h.b16 %v168
    %v380 = vunpack.c.l.b16 %v169
    %v381 = vunpack.c.h.b16 %v169
    %v382 = vunpack.c.l.b16 %v170
    %v383 = vunpack.c.h.b16 %v170
    %v384 = vunpack.c.l.b16 %v171
    %v385 = vunpack.c.h.b16 %v171
    %v386 = vpack.c.b16 %v262, %v258
    %v387 = vpack.c.b16 %v263, %v259
    %v388 = vpack.c.b16 %v264, %v260
    %v389 = vpack.c.b16 %v265, %v261
    %v390 = vpack.c.b16 %v270, %v266
    %v391 = vpack.c.b16 %v271, %v267
    %v392 = vpack.c.b16 %v272, %v268
    %v393 = vpack.c.b16 %v273, %v269
    %v394 = vpack.c.b16 %v278, %v274
    %v395 = vpack.c.b16 %v279, %v275
    %v396 = vpack.c.b16 %v280, %v276
    %v397 = vpack.c.b16 %v281, %v277
    %v398 = vpack.c.b16 %v286, %v282
    %v399 = vpack.c.b16 %v287, %v283
    %v400 = vpack.c.b16 %v288, %v284
    %v401 = vpack.c.b16 %v289, %v285
    %v402 = vpack.c.b16 %v294, %v290
    %v403 = vpack.c.b16 %v295, %v291
    %v404 = vpack.c.b16 %v296, %v292
    %v405 = vpack.c.b16 %v297, %v293
    %v406 = vpack.c.b16 %v302, %v298
    %v407 = vpack.c.b16 %v303, %v299
    %v408 = vpack.c.b16 %v304, %v300
    %v409 = vpack.c.b16 %v305, %v301
    %v410 = vpack.c.b16 %v310, %v306
    %v411 = vpack.c.b16 %v311, %v307
    %v412 = vpack.c.b16 %v312, %v308
    %v413 = vpack.c.b16 %v313, %v309
    %v414 = vpack.c.b16 %v318, %v314
    %v415 = vpack.c.b16 %v319, %v315
    %v416 = vpack.c.b16 %v320, %v316
    %v417 = vpack.c.b16 %v321, %v317
    %v418 = vpack.c.b16 %v326, %v322
    %v419 = vpack.c.b16 %v327, %v323
    %v420 = vpack.c.b16 %v328, %v324
    %v421 = vpack.c.b16 %v329, %v325
    %v422 = vpack.c.b16 %v334, %v330
    %v423 = vpack.c.b16 %v335, %v331
    %v424 = vpack.c.b16 %v336, %v332
    %v425 = vpack.c.b16 %v337, %v333
    %v426 = vpack.c.b16 %v342, %v338
    %v427 = vpack.c.b16 %v343, %v339
    %v428 = vpack.c.b16 %v344, %v340
    %v429 = vpack.c.b16 %v345, %v341
    %v430 = vpack.c.b16 %v350, %v346
    %v431 = vpack.c.b16 %v351, %v347
    %v432 = vpack.c.b16 %v352, %v348
    %v433 = vpack.c.b16 %v353, %v349
    %v434 = vpack.c.b16 %v358, %v354
    %v435 = vpack.c.b16 %v359, %v355
    %v436 = vpack.c.b16 %v360, %v356
    %v437 = vpack.c.b16 %v361, %v357
    %v438 = vpack.c.b16 %v366, %v362
    %v439 = vpack.c.b16 %v367, %v363
    %v440 = vpack.c.b16 %v368, %v364
    %v441 = vpack.c.b16 %v369, %v365
    %v442 = vpack.c.b16 %v374, %v370
    %v443 = vpack.c.b16 %v375, %v371
    %v444 = vpack.c.b16 %v376, %v372
    %v445 = vpack.c.b16 %v377, %v373
    %v446 = vpack.c.b16 %v382, %v378
    %v447 = vpack.c.b16 %v383, %v379
    %v448 = vpack.c.b16 %v384, %v380
    %v449 = vpack.c.b16 %v385, %v381
    %514 = vmatprep.subr.bf16.mxu0 %v415
    %515 = vmatpush1.bf16.msra.mxu0 %v414
    %516 = vmatprep.subr.bf16.mxu0 %v411
    %517 = vmatpush1.bf16.msra.mxu0 %v410
    %518 = vmatprep.subr.bf16.mxu0 %v407
    %519 = vmatpush1.bf16.msra.mxu0 %v406
    %520 = vmatprep.subr.bf16.mxu0 %v403
    %521 = vmatpush1.bf16.msra.mxu0 %v402
    %522 = vmatprep.subr.bf16.mxu0 %v399
    %523 = vmatpush1.bf16.msra.mxu0 %v398
    %524 = vmatprep.subr.bf16.mxu0 %v395
    %525 = vmatpush1.bf16.msra.mxu0 %v394
    %526 = vmatprep.subr.bf16.mxu0 %v391
    %527 = vmatpush1.bf16.msra.mxu0 %v390
    %528 = vmatprep.subr.bf16.mxu0 %v387
    %529 = vmatpush1.bf16.msra.mxu0 %v386
    %530 = vmatprep.subr.bf16.mxu0 %v447
    %531 = vmatpush2.bf16.msra.mxu0 %v446
    %532 = vmatprep.subr.bf16.mxu0 %v443
    %533 = vmatpush2.bf16.msra.mxu0 %v442
    %534 = vmatprep.subr.bf16.mxu0 %v439
    %535 = vmatpush2.bf16.msra.mxu0 %v438
    %536 = vmatprep.subr.bf16.mxu0 %v435
    %537 = vmatpush2.bf16.msra.mxu0 %v434
    %538 = vmatprep.subr.bf16.mxu0 %v431
    %539 = vmatpush2.bf16.msra.mxu0 %v430
    %540 = vmatprep.subr.bf16.mxu0 %v427
    %541 = vmatpush2.bf16.msra.mxu0 %v426
    %542 = vmatprep.subr.bf16.mxu0 %v423
    %543 = vmatpush2.bf16.msra.mxu0 %v422
    %544 = vmatprep.subr.bf16.mxu0 %v419
    %545 = vmatpush2.bf16.msra.mxu0 %v418
    %546 = vmatprep.mubr.bf16.mxu0 %v107
    %547 = vmatmul.mubr.bf16.gmra.mxu0 %v106
    %v548 = vpop.f32.mrf.mxu0
    %v549 = vadd.f32 %v177, %v548
    %v550 = vpop.f32.mrf.mxu0
    %v551 = vadd.f32 %v181, %v550
    %v552 = vpop.f32.mrf.mxu0
    %v553 = vpop.f32.mrf.mxu0
    %554 = vdwg.mxu0
    %555 = vmatprep.subr.bf16.mxu0 %v417
    %556 = vmatpush1.bf16.msra.mxu0 %v416
    %557 = vmatprep.subr.bf16.mxu0 %v413
    %558 = vmatpush1.bf16.msra.mxu0 %v412
    %559 = vmatprep.subr.bf16.mxu0 %v409
    %560 = vmatpush1.bf16.msra.mxu0 %v408
    %561 = vmatprep.subr.bf16.mxu0 %v405
    %562 = vmatpush1.bf16.msra.mxu0 %v404
    %563 = vmatprep.subr.bf16.mxu0 %v401
    %564 = vmatpush1.bf16.msra.mxu0 %v400
    %565 = vmatprep.subr.bf16.mxu0 %v397
    %566 = vmatpush1.bf16.msra.mxu0 %v396
    %567 = vmatprep.subr.bf16.mxu0 %v393
    %568 = vmatpush1.bf16.msra.mxu0 %v392
    %569 = vmatprep.subr.bf16.mxu0 %v389
    %570 = vmatpush1.bf16.msra.mxu0 %v388
    %571 = vmatprep.subr.bf16.mxu0 %v449
    %572 = vmatpush2.bf16.msra.mxu0 %v448
    %573 = vmatprep.subr.bf16.mxu0 %v445
    %574 = vmatpush2.bf16.msra.mxu0 %v444
    %575 = vmatprep.subr.bf16.mxu0 %v441
    %576 = vmatpush2.bf16.msra.mxu0 %v440
    %577 = vmatprep.subr.bf16.mxu0 %v437
    %578 = vmatpush2.bf16.msra.mxu0 %v436
    %579 = vmatprep.subr.bf16.mxu0 %v433
    %580 = vmatpush2.bf16.msra.mxu0 %v432
    %581 = vmatprep.subr.bf16.mxu0 %v429
    %582 = vmatpush2.bf16.msra.mxu0 %v428
    %583 = vmatprep.subr.bf16.mxu0 %v425
    %584 = vmatpush2.bf16.msra.mxu0 %v424
    %585 = vmatprep.subr.bf16.mxu0 %v421
    %586 = vmatpush2.bf16.msra.mxu0 %v420
    %587 = vmatprep.mubr.bf16.mxu0 %v107
    %588 = vmatmul.mubr.bf16.gmra.mxu0 %v106
    %v589 = vpop.f32.mrf.mxu0
    %v590 = vadd.f32 %v185, %v589
    %v591 = vpop.f32.mrf.mxu0
    %v592 = vadd.f32 %v189, %v591
    %v593 = vpop.f32.mrf.mxu0
    %v594 = vpop.f32.mrf.mxu0
    %595 = vdwg.mxu0
    %596 = vst [vmem:[#allocation2] sm:$0xff] %v549
    %597 = vst [vmem:[#allocation2 + $0x8] sm:$0xff] %v551
    %598 = vst [vmem:[#allocation2 + $0x10] sm:$0xff] %v590
    %599 = vst [vmem:[#allocation2 + $0x18] sm:$0xff] %v592
    // Predicated region
    $region22: #{_decoder_call.1} parent=1 // pred_check
      _
    $region23: #{_decoder_call.1} parent=1 // pred_check_branch
      %601 = sbr.rel (0) target = $region25
    $region24: #{_decoder_call.1} parent=1 // pred_region
      %s603 = ssub.s32 512, 512
      %604 = vsyncadd [#allocation3], %s603
      %s606 = sshll.u32 [#allocation2], 4
      %s607 = int_to_ptr.vmem [resolvable:$true] %s606
      %609 = dma.vmem_to_hbm [thread:$0]  %s607, 512, %s5, [#allocation3]
    $region25: #{_decoder_call.1} parent=1 // pred_fallthru
      _
    // Predicated region
    $region26: #{_decoder_call.1} parent=1 // pred_check
      _
    $region27: #{_decoder_call.1} parent=1 // pred_check_branch
      %611 = sbr.rel (0) target = $region29
    $region28: #{_decoder_call.1} parent=1 // pred_region
      %612 = dma.done [#allocation3], 512
    $region29: #{_decoder_call.1} parent=1 // pred_fallthru
      _
    %613 = vsyncpa [#allocation3], 1

</llo_original>
